<compile_context>
chip_gen: v7x
topology: tpu7x:2x2x1
jax: 0.10.0
libtpu: 0.0.40
codegen_flags: <defaults>
</compile_context>

<pallas_src>
import functools

import jax
import jax.numpy as jnp
from jax.experimental import pallas as pl
from jax.experimental.pallas import tpu as pltpu

LANES = 128  # vreg lane width (minor dim)


def _sublane_align(dtype):
    """Sublane multiple for a dtype's native (sublane,128) tile: f32->8, bf16->16, i8->32."""
    return max(8, 32 // jnp.dtype(dtype).itemsize)


def _num_tensorcores():
    """2 only on v7x (2 TCs/chip); v5e/v6e expose a single TensorCore per device."""
    try:
        kind = jax.devices()[0].device_kind.lower().replace(" ", "")
    except Exception:
        return 1
    return 2 if ("v7" in kind or "tpu7" in kind) else 1


def _contrastive_loss_kernel(d_ref, l_ref, o_ref, acc_ref, *,
                             margin, rows, tr, tiles_per_core, binary_labels):
    """Process one (tr, 128) tile; fold into an (8, 128) resident accumulator."""
    c = pl.program_id(0)  # core / stream axis
    j = pl.program_id(1)  # reduction axis (row tiles handled by this stream)

    @pl.when(j == 0)
    def _init():
        acc_ref[...] = jnp.zeros_like(acc_ref)

    d = d_ref[...].astype(jnp.float32)            # (tr, 128), f32 or bf16 input
    hinge = jnp.maximum(margin - d, 0.0)
    if binary_labels:
        # Integer/bool labels: binary identity, no int->f32 unpack, fewer VALU ops.
        loss = jnp.where(l_ref[...] != 0, hinge * hinge, d * d)
    else:
        # Float labels: exact general formula (matches PyTorch for soft labels too).
        lab = l_ref[...].astype(jnp.float32)
        loss = (1.0 - lab) * (d * d) + lab * (hinge * hinge)

    def accumulate(x):
        # Fold 8-row groups into the (8,128) accumulator: pure vreg adds, the
        # reshape splits only the sublane axis (no cross-(8,128)-tile movement).
        acc_ref[...] += jnp.sum(x.reshape(tr // 8, 8, LANES), axis=0)

    tile_idx = c * tiles_per_core + j             # UNclamped global tile index
    row0 = tile_idx * tr

    @pl.when(row0 + tr <= rows)
    def _full_tile():                             # steady state: no masking
        accumulate(loss)

    @pl.when(row0 + tr > rows)
    def _tail_tile():
        # Partial / out-of-range block: rows >= `rows` hold stale VMEM data and
        # must be masked. (Zero-padded elements inside valid rows contribute 0
        # by construction: d=0, label=0 => loss term is 0 in both formulas.)
        row_iota = jax.lax.broadcasted_iota(jnp.int32, (tr, LANES), 0)
        valid = (row0 + row_iota) < rows
        accumulate(jnp.where(valid, loss, 0.0))

    @pl.when(j == pl.num_programs(1) - 1)
    def _finalize():
        o_ref[0] = acc_ref[...]                   # one (8,128) store per stream


def contrastive_loss(distance, label, margin=1.0, *, tile_rows=4096):
    """Pallas TPU implementation of ContrastiveLoss.forward (mean over pairs)."""
    assert distance.shape == label.shape
    assert tile_rows % 32 == 0
    n = int(distance.size)
    assert n > 0
    margin = float(margin)  # static (module constructor constant in PyTorch)

    # ---- dtype handling: avoid extra wrapper-side HBM cast passes ----
    d_flat = distance.reshape(-1)
    if d_flat.dtype not in (jnp.float32, jnp.bfloat16):
        d_flat = d_flat.astype(jnp.float32)

    l_flat = label.reshape(-1)
    if jnp.issubdtype(l_flat.dtype, jnp.floating):
        binary_labels = False
        if l_flat.dtype not in (jnp.float32, jnp.bfloat16):
            l_flat = l_flat.astype(jnp.float32)
    else:
        # Integer/bool labels are treated as binary {0, nonzero}.
        binary_labels = True
        if l_flat.dtype == jnp.bool_:
            l_flat = l_flat.astype(jnp.int8)

    row_align = max(_sublane_align(d_flat.dtype), _sublane_align(l_flat.dtype))

    # ---- lane-dense (rows, 128) view; pad only to lane/sublane granularity ----
    rows = pl.cdiv(n, LANES)
    if rows < row_align:
        rows = row_align
    padded_n = rows * LANES
    if padded_n != n:
        # <= row_align*128 extra zero pairs; (d=0, label=0) contributes exactly 0.
        d_flat = jnp.pad(d_flat, (0, padded_n - n))
        l_flat = jnp.pad(l_flat, (0, padded_n - n))
    d2 = d_flat.reshape(rows, LANES)
    l2 = l_flat.reshape(rows, LANES)

    # ---- tiling / core split ----
    tr = min(int(tile_rows), (rows // row_align) * row_align)  # multiple of row_align, <= rows
    tiles_total = pl.cdiv(rows, tr)
    ncores = min(_num_tensorcores(), tiles_total)   # 1 on v5e/v6e, up to 2 on v7x
    tiles_per_core = pl.cdiv(tiles_total, ncores)
    last_tile = tiles_total - 1

    def in_map(c, j):
        # Clamp so a fully-out-of-range tile re-reads the last valid block
        # (its rows are masked in-kernel via the UNclamped index).
        return (jnp.minimum(c * tiles_per_core + j, last_tile), 0)

    kernel = functools.partial(
        _contrastive_loss_kernel,
        margin=margin, rows=rows, tr=tr,
        tiles_per_core=tiles_per_core, binary_labels=binary_labels)

    def _call(core_sem):
        return pl.pallas_call(
            kernel,
            out_shape=jax.ShapeDtypeStruct((ncores, 8, LANES), jnp.float32),
            grid_spec=pltpu.PrefetchScalarGridSpec(
                num_scalar_prefetch=0,
                grid=(ncores, tiles_per_core),
                in_specs=[
                    pl.BlockSpec((tr, LANES), in_map),  # distance tile (f32/bf16)
                    pl.BlockSpec((tr, LANES), in_map),  # label tile (f32/bf16/int8)
                ],
                # Constant block index along the reduction axis -> resident,
                # written back once per stream.
                out_specs=pl.BlockSpec((1, 8, LANES), lambda c, j: (c, 0, 0)),
                scratch_shapes=[pltpu.VMEM((8, LANES), jnp.float32)],
            ),
            compiler_params=pltpu.CompilerParams(
                dimension_semantics=(core_sem, pltpu.ARBITRARY)),
        )(d2, l2)

    if ncores > 1:
        # v7x: request real TensorCore sharding of the leading axis; fall back
        # to plain "parallel" if CORE_PARALLEL lowering is unavailable.
        try:
            partials = jax.block_until_ready(_call(pltpu.CORE_PARALLEL))
        except Exception:
            partials = _call(pltpu.PARALLEL)
    else:
        partials = _call(pltpu.ARBITRARY)

    # Combine per-core (8,128) partial sums and apply the mean scaling host-side.
    return jnp.sum(partials) * (1.0 / n)


def contrastive_loss_ref(distance, label, margin=1.0):
    """Plain-JAX reference mirroring the PyTorch forward exactly."""
    d = distance.astype(jnp.float32)
    lab = label.astype(jnp.float32)
    return jnp.mean(
        (1.0 - lab) * jnp.square(d)
        + lab * jnp.square(jnp.maximum(margin - d, 0.0))
    )


if __name__ == "__main__":
    key = jax.random.PRNGKey(0)
    margin = 1.0

    # Exercise both the float-label (general formula) and integer-label
    # (binary fast path) code paths, plus a tail-masked non-multiple size.
    for batch, label_dtype in ((8, jnp.float32), (1000, jnp.float32), (1000, jnp.int8)):
        key, k_d, k_l = jax.random.split(key, 3)
        distance = jnp.abs(jax.random.normal(k_d, (batch,), dtype=jnp.float32))
        label = jax.random.bernoulli(k_l, p=0.5, shape=(batch,)).astype(label_dtype)

        out = contrastive_loss(distance, label, margin=margin)
        out = jax.block_until_ready(out)

        ref = contrastive_loss_ref(distance, label, margin=margin)
        assert jnp.allclose(out, ref, rtol=1e-6, atol=1e-6), (batch, str(label_dtype), out, ref)

    print("KERNEL_OK")
</pallas_src>

<mosaic_0001>
module attributes {stable_mosaic.version = 11 : i64} {
  func.func @_contrastive_loss_kernel(%arg0: i32, %arg1: i32, %arg2: memref<8x128xf32, #tpu.memory_space<vmem>>, %arg3: memref<8x128xf32, #tpu.memory_space<vmem>>, %arg4: memref<1x8x128xf32, #tpu.memory_space<vmem>>, %arg5: memref<8x128xf32, #tpu.memory_space<vmem>>) attributes {dimension_semantics = [#tpu.dimension_semantics<arbitrary>, #tpu.dimension_semantics<arbitrary>], iteration_bounds = array<i64: 1, 1>, scalar_prefetch = 0 : i64, scratch_operands = 1 : i64, tpu.core_type = #tpu.core_type<tc>, window_params = [{transform_indices = @transform_0, window_bounds = array<i64: 8, 128>}, {transform_indices = @transform_1, window_bounds = array<i64: 8, 128>}, {transform_indices = @transform_2, window_bounds = array<i64: 1, 8, 128>}]} {
    %c0_i32 = arith.constant 0 : i32
    %0 = arith.cmpi eq, %arg1, %c0_i32 : i32
    %1 = arith.extui %0 : i1 to i32
    %c0_i32_0 = arith.constant 0 : i32
    %2 = arith.cmpi ne, %1, %c0_i32_0 : i32
    scf.if %2 {
      %cst_14 = arith.constant 0.000000e+00 : f32
      %30 = vector.broadcast %cst_14 : f32 to vector<8x128xf32>
      %c0_15 = arith.constant 0 : index
      %c0_16 = arith.constant 0 : index
      %31 = vector.load %arg5[%c0_15, %c0_16] : memref<8x128xf32, #tpu.memory_space<vmem>>, vector<8x128xf32>
      tpu.vector_store %arg5[%c0_15, %c0_16], %30 {strides = array<i32>} : memref<8x128xf32, #tpu.memory_space<vmem>>, vector<8x128xf32>,
    } else {
    }
    %c0 = arith.constant 0 : index
    %c0_1 = arith.constant 0 : index
    %3 = vector.load %arg2[%c0, %c0_1] : memref<8x128xf32, #tpu.memory_space<vmem>>, vector<8x128xf32>
    %cst = arith.constant 1.000000e+00 : f32
    %4 = vector.broadcast %cst : f32 to vector<8x128xf32>
    %5 = arith.subf %4, %3 : vector<8x128xf32>
    %cst_2 = arith.constant 0.000000e+00 : f32
    %6 = vector.broadcast %cst_2 : f32 to vector<8x128xf32>
    %7 = arith.maximumf %5, %6 : vector<8x128xf32>
    %c0_3 = arith.constant 0 : index
    %c0_4 = arith.constant 0 : index
    %8 = vector.load %arg3[%c0_3, %c0_4] : memref<8x128xf32, #tpu.memory_space<vmem>>, vector<8x128xf32>
    %cst_5 = arith.constant 1.000000e+00 : f32
    %9 = vector.broadcast %cst_5 : f32 to vector<8x128xf32>
    %10 = arith.subf %9, %8 : vector<8x128xf32>
    %11 = arith.mulf %3, %3 : vector<8x128xf32>
    %12 = arith.mulf %10, %11 : vector<8x128xf32>
    %13 = arith.mulf %7, %7 : vector<8x128xf32>
    %14 = arith.mulf %8, %13 : vector<8x128xf32>
    %15 = arith.addf %12, %14 : vector<8x128xf32>
    %c1_i32 = arith.constant 1 : i32
    %16 = arith.muli %arg0, %c1_i32 : i32
    %17 = arith.addi %16, %arg1 : i32
    %c8_i32 = arith.constant 8 : i32
    %18 = arith.muli %17, %c8_i32 : i32
    %c8_i32_6 = arith.constant 8 : i32
    %19 = arith.addi %18, %c8_i32_6 : i32
    %c8_i32_7 = arith.constant 8 : i32
    %20 = arith.cmpi sle, %19, %c8_i32_7 : i32
    %21 = arith.extui %20 : i1 to i32
    %c0_i32_8 = arith.constant 0 : i32
    %22 = arith.cmpi ne, %21, %c0_i32_8 : i32
    scf.if %22 {
      %c0_14 = arith.constant 0 : index
      %c0_15 = arith.constant 0 : index
      %30 = vector.load %arg5[%c0_14, %c0_15] : memref<8x128xf32, #tpu.memory_space<vmem>>, vector<8x128xf32>
      %31 = vector.shape_cast %15 : vector<8x128xf32> to vector<1x8x128xf32>
      %cst_16 = arith.constant dense<0.000000e+00> : vector<8x128xf32>
      %32 = vector.multi_reduction <add>, %31, %cst_16 [0] : vector<1x8x128xf32> to vector<8x128xf32>
      %33 = arith.addf %30, %32 : vector<8x128xf32>
      %c0_17 = arith.constant 0 : index
      %c0_18 = arith.constant 0 : index
      %34 = vector.load %arg5[%c0_17, %c0_18] : memref<8x128xf32, #tpu.memory_space<vmem>>, vector<8x128xf32>
      tpu.vector_store %arg5[%c0_17, %c0_18], %33 {strides = array<i32>} : memref<8x128xf32, #tpu.memory_space<vmem>>, vector<8x128xf32>,
    } else {
    }
    %c8_i32_9 = arith.constant 8 : i32
    %23 = arith.addi %18, %c8_i32_9 : i32
    %c8_i32_10 = arith.constant 8 : i32
    %24 = arith.cmpi sgt, %23, %c8_i32_10 : i32
    %25 = arith.extui %24 : i1 to i32
    %c0_i32_11 = arith.constant 0 : i32
    %26 = arith.cmpi ne, %25, %c0_i32_11 : i32
    scf.if %26 {
      %30 = tpu.iota {dimensions = array<i32: 0>} : vector<8x128xi32>
      %31 = vector.broadcast %18 : i32 to vector<8x128xi32>
      %32 = arith.addi %31, %30 : vector<8x128xi32>
      %c8_i32_14 = arith.constant 8 : i32
      %33 = vector.broadcast %c8_i32_14 : i32 to vector<8x128xi32>
      %34 = arith.cmpi slt, %32, %33 : vector<8x128xi32>
      %cst_15 = arith.constant 0.000000e+00 : f32
      %35 = vector.broadcast %cst_15 : f32 to vector<8x128xf32>
      %36 = arith.select %34, %15, %35 : vector<8x128xi1>, vector<8x128xf32>
      %c0_16 = arith.constant 0 : index
      %c0_17 = arith.constant 0 : index
      %37 = vector.load %arg5[%c0_16, %c0_17] : memref<8x128xf32, #tpu.memory_space<vmem>>, vector<8x128xf32>
      %38 = vector.shape_cast %36 : vector<8x128xf32> to vector<1x8x128xf32>
      %cst_18 = arith.constant dense<0.000000e+00> : vector<8x128xf32>
      %39 = vector.multi_reduction <add>, %38, %cst_18 [0] : vector<1x8x128xf32> to vector<8x128xf32>
      %40 = arith.addf %37, %39 : vector<8x128xf32>
      %c0_19 = arith.constant 0 : index
      %c0_20 = arith.constant 0 : index
      %41 = vector.load %arg5[%c0_19, %c0_20] : memref<8x128xf32, #tpu.memory_space<vmem>>, vector<8x128xf32>
      tpu.vector_store %arg5[%c0_19, %c0_20], %40 {strides = array<i32>} : memref<8x128xf32, #tpu.memory_space<vmem>>, vector<8x128xf32>,
    } else {
    }
    %c0_i32_12 = arith.constant 0 : i32
    %27 = arith.cmpi eq, %arg1, %c0_i32_12 : i32
    %28 = arith.extui %27 : i1 to i32
    %c0_i32_13 = arith.constant 0 : i32
    %29 = arith.cmpi ne, %28, %c0_i32_13 : i32
    scf.if %29 {
      %c0_14 = arith.constant 0 : index
      %c0_15 = arith.constant 0 : index
      %30 = vector.load %arg5[%c0_14, %c0_15] : memref<8x128xf32, #tpu.memory_space<vmem>>, vector<8x128xf32>
      %c0_16 = arith.constant 0 : index
      %c0_17 = arith.constant 0 : index
      %c0_18 = arith.constant 0 : index
      %31 = vector.load %arg4[%c0_16, %c0_17, %c0_18] : memref<1x8x128xf32, #tpu.memory_space<vmem>>, vector<1x8x128xf32>
      %32 = vector.shape_cast %31 : vector<1x8x128xf32> to vector<8x128xf32>
      %33 = vector.shape_cast %30 : vector<8x128xf32> to vector<1x8x128xf32>
      tpu.vector_store %arg4[%c0_16, %c0_17, %c0_18], %33 {strides = array<i32>} : memref<1x8x128xf32, #tpu.memory_space<vmem>>, vector<1x8x128xf32>,
    } else {
    }
    return
  }
  func.func @transform_0(%arg0: i32, %arg1: i32) -> (i32, i32) {
    %c1_i32 = arith.constant 1 : i32
    %0 = arith.muli %arg0, %c1_i32 : i32
    %1 = arith.addi %0, %arg1 : i32
    %c0_i32 = arith.constant 0 : i32
    %2 = arith.minsi %1, %c0_i32 : i32
    %c0_i32_0 = arith.constant 0 : i32
    %c0_i32_1 = arith.constant 0 : i32
    return %2, %c0_i32_0 : i32, i32
  }
  func.func @transform_1(%arg0: i32, %arg1: i32) -> (i32, i32) {
    %c1_i32 = arith.constant 1 : i32
    %0 = arith.muli %arg0, %c1_i32 : i32
    %1 = arith.addi %0, %arg1 : i32
    %c0_i32 = arith.constant 0 : i32
    %2 = arith.minsi %1, %c0_i32 : i32
    %c0_i32_0 = arith.constant 0 : i32
    %c0_i32_1 = arith.constant 0 : i32
    return %2, %c0_i32_0 : i32, i32
  }
  func.func @transform_2(%arg0: i32, %arg1: i32) -> (i32, i32, i32) {
    %c0_i32 = arith.constant 0 : i32
    %c0_i32_0 = arith.constant 0 : i32
    %c0_i32_1 = arith.constant 0 : i32
    return %arg0, %c0_i32, %c0_i32_0 : i32, i32, i32
  }
}

</mosaic_0001>

<llo_original>
// kernel: tpu_custom_call.1
$region0: #{tpu_custom_call.1}
  #allocation0 [shape = 'u32[]', space=smem, size = 0x4, offset = 0x4, fixed_abs, tag = 'smem constant byte address 0x4 - core index']
  #allocation1 [shape = 'u32[144,128]{1,0:T(1,128)}', space=vmem, size = 0x12000, scoped, tag = 'internal scratch']
  #allocation2 [shape = 'f32[8,128]{1,0:T(8,128)}', space=vmem, size = 0x1000, scoped, tag = 'scratch operand']
  %s0 = inlined_call_operand.hbm [shape: f32[8,128], index: 0, kind: input, shape index: {}]
  %s1 = inlined_call_operand.hbm [shape: f32[8,128], index: 1, kind: input, shape index: {}]
  %s2 = inlined_call_operand.hbm [shape: f32[1,8,128], index: 2, kind: output, shape index: {}]
  %s3 = sld [smem:[#allocation0]]
  $region42: #{tpu_custom_call.1} parent=0
    _
  %s5 = ssub.s32 1, %s3
  %s6 = scalar_select 0, %s5, %s3
  $region1: #{tpu_custom_call.1} parent=0
    #allocation3 [shape = 'u8[4096]{0}', space=vmem, size = 0x1000, scoped, tag = 'input window, operand 0, single buffered']
    #allocation4 [shape = 's32[1]{0}', space=sflag, size = 0x4, scoped, tag = 'scoped memory for tpu_custom_call.1']
    #allocation5 [shape = 's32[1]{0}', space=sflag, size = 0x4, scoped, tag = 'scoped memory for tpu_custom_call.1']
    #allocation6 [shape = 'u8[4096]{0}', space=vmem, size = 0x1000, scoped, tag = 'input window, operand 1, single buffered']
    #allocation7 [shape = 's32[1]{0}', space=sflag, size = 0x4, scoped, tag = 'scoped memory for tpu_custom_call.1']
    #allocation8 [shape = 'u8[4096]{0}', space=vmem, size = 0x1000, scoped, tag = 'output window, operand 0, single buffered']
    %7 = vsyncpa [#allocation4], 0
    %8 = vsyncpa [#allocation7], 0
    %9 = vsyncpa [#allocation5], 0
    // Predicated region
    $region2: #{tpu_custom_call.1} parent=1 // pred_check
      _
    $region3: #{tpu_custom_call.1} parent=1 // pred_check_branch
      %11 = sbr.rel (0) target = $region5
    $region4: #{tpu_custom_call.1} parent=1 // pred_region
      %s12 = sadd.s32 0, 0
      %p13 = scmp.lt.s32.totalorder %s12, 0
      %s14 = scalar_select %p13, %s12, 0
      %s16 = ssub.s32 128, 128
      %17 = vsyncadd [#allocation4], %s16
      %s18 = smul.addr %s14, 128
      %s19 = scalar_lea.hbm %s0, %s18
      %s21 = sshll.u32 [#allocation3], 4
      %s22 = int_to_ptr.vmem [resolvable:$true] %s21
      %24 = dma.hbm_to_vmem [thread:$0]  %s19, 128, %s22, [#allocation4]
    $region5: #{tpu_custom_call.1} parent=1 // pred_fallthru
      _
    // Predicated region
    $region6: #{tpu_custom_call.1} parent=1 // pred_check
      _
    $region7: #{tpu_custom_call.1} parent=1 // pred_check_branch
      %26 = sbr.rel (0) target = $region9
    $region8: #{tpu_custom_call.1} parent=1 // pred_region
      %s27 = sadd.s32 0, 0
      %p28 = scmp.lt.s32.totalorder %s27, 0
      %s29 = scalar_select %p28, %s27, 0
      %s31 = ssub.s32 128, 128
      %32 = vsyncadd [#allocation7], %s31
      %s33 = smul.addr %s29, 128
      %s34 = scalar_lea.hbm %s1, %s33
      %s36 = sshll.u32 [#allocation6], 4
      %s37 = int_to_ptr.vmem [resolvable:$true] %s36
      %39 = dma.hbm_to_vmem [thread:$0]  %s34, 128, %s37, [#allocation7]
    $region9: #{tpu_custom_call.1} parent=1 // pred_fallthru
      _
    // Predicated region
    $region10: #{tpu_custom_call.1} parent=1 // pred_check
      _
    $region11: #{tpu_custom_call.1} parent=1 // pred_check_branch
      %41 = sbr.rel (0) target = $region13
    $region12: #{tpu_custom_call.1} parent=1 // pred_region
      %42 = dma.done [#allocation4], 128
    $region13: #{tpu_custom_call.1} parent=1 // pred_fallthru
      _
    // Predicated region
    $region14: #{tpu_custom_call.1} parent=1 // pred_check
      _
    $region15: #{tpu_custom_call.1} parent=1 // pred_check_branch
      %44 = sbr.rel (0) target = $region17
    $region16: #{tpu_custom_call.1} parent=1 // pred_region
      %45 = dma.done [#allocation7], 128
    $region17: #{tpu_custom_call.1} parent=1 // pred_fallthru
      _
    %s46 = sadd.s32 0, 0
    %p47 = scmp.lt.s32.totalorder %s46, 0
    %s48 = scalar_select %p47, %s46, 0
    %s49 = sadd.s32 0, 0
    %p50 = scmp.lt.s32.totalorder %s49, 0
    %s51 = scalar_select %p50, %s49, 0
    %p52 = scmp.eq.s32.totalorder 0, 0
    // Predicated region
    $region18: #{tpu_custom_call.1} parent=1 // pred_check
      %p53 = pneg %p52
    $region19: #{tpu_custom_call.1} parent=1 // pred_check_branch
      %55 = sbr.rel (%p53) target = $region21
    $region20: #{tpu_custom_call.1} parent=1 // pred_region
      %56 = vst [vmem:[#allocation2] sm:$0xff] 0.0
    $region21: #{tpu_custom_call.1} parent=1 // pred_fallthru
      _
    %v57 = vld [vmem:[#allocation3] sm:$0xff]
    %v58 = vsub.f32 1.0, %v57
    %v59 = vmax.f32 %v58, 0.0
    %v60 = vld [vmem:[#allocation6] sm:$0xff]
    %v61 = vsub.f32 1.0, %v60
    %v62 = vmul.f32 %v57, %v57
    %v63 = vmul.f32 %v61, %v62
    %v64 = vmul.f32 %v59, %v59
    %v65 = vmul.f32 %v60, %v64
    %v66 = vadd.f32 %v63, %v65
    %s67 = sadd.s32 0, 0
    %s68 = smul.u32 %s67, 8
    %s69 = sadd.s32 %s68, 8
    %p70 = scmp.le.s32.totalorder %s69, 8
    // Predicated region
    $region22: #{tpu_custom_call.1} parent=1 // pred_check
      %p71 = pneg %p70
    $region23: #{tpu_custom_call.1} parent=1 // pred_check_branch
      %73 = sbr.rel (%p71) target = $region25
    $region24: #{tpu_custom_call.1} parent=1 // pred_region
      %v74 = vld [vmem:[#allocation2] sm:$0xff]
      %v75 = vadd.f32 %v66, 0.0
      %v76 = vadd.f32 %v74, %v75
      %77 = vst [vmem:[#allocation2] sm:$0xff] %v76
    $region25: #{tpu_custom_call.1} parent=1 // pred_fallthru
      _
    %p78 = scmp.gt.s32.totalorder %s69, 8
    // Predicated region
    $region26: #{tpu_custom_call.1} parent=1 // pred_check
      %p79 = pneg %p78
    $region27: #{tpu_custom_call.1} parent=1 // pred_check_branch
      %81 = sbr.rel (%p79) target = $region29
    $region28: #{tpu_custom_call.1} parent=1 // pred_region
      %v82 = vlaneseq
      %v83 = vshrl.u32 %v82, 7
      %v84 = vstv %s68
      %v85 = vadd.s32 %v84, %v83
      %vm86 = vcmp.lt.s32.totalorder %v85, 8
      %v87 = vsel %vm86, %v66, 0.0
      %v88 = vld [vmem:[#allocation2] sm:$0xff]
      %v89 = vadd.f32 %v87, 0.0
      %v90 = vadd.f32 %v88, %v89
      %91 = vst [vmem:[#allocation2] sm:$0xff] %v90
    $region29: #{tpu_custom_call.1} parent=1 // pred_fallthru
      _
    // Predicated region
    $region30: #{tpu_custom_call.1} parent=1 // pred_check
      %p92 = pneg %p52
    $region31: #{tpu_custom_call.1} parent=1 // pred_check_branch
      %94 = sbr.rel (%p92) target = $region33
    $region32: #{tpu_custom_call.1} parent=1 // pred_region
      %v95 = vld [vmem:[#allocation2] sm:$0xff]
      %96 = vst [vmem:[#allocation8] sm:$0xff] %v95
    $region33: #{tpu_custom_call.1} parent=1 // pred_fallthru
      _
    // Predicated region
    $region34: #{tpu_custom_call.1} parent=1 // pred_check
      _
    $region35: #{tpu_custom_call.1} parent=1 // pred_check_branch
      %98 = sbr.rel (0) target = $region37
    $region36: #{tpu_custom_call.1} parent=1 // pred_region
      %s100 = ssub.s32 128, 128
      %101 = vsyncadd [#allocation5], %s100
      %s103 = sshll.u32 [#allocation8], 4
      %s104 = int_to_ptr.vmem [resolvable:$true] %s103
      %106 = dma.vmem_to_hbm [thread:$0]  %s104, 128, %s2, [#allocation5]
    $region37: #{tpu_custom_call.1} parent=1 // pred_fallthru
      _
    // Predicated region
    $region38: #{tpu_custom_call.1} parent=1 // pred_check
      _
    $region39: #{tpu_custom_call.1} parent=1 // pred_check_branch
      %108 = sbr.rel (0) target = $region41
    $region40: #{tpu_custom_call.1} parent=1 // pred_region
      %109 = dma.done [#allocation5], 128
    $region41: #{tpu_custom_call.1} parent=1 // pred_fallthru
      _
    %110 = vsyncpa [#allocation4], 1
    %111 = vsyncpa [#allocation7], 1
    %112 = vsyncpa [#allocation5], 1

</llo_original>
